<compile_context>
chip_gen: v7x
topology: tpu7x:2x2x1
jax: 0.10.0
libtpu: 0.0.40
codegen_flags: <defaults>
</compile_context>

<pallas_src>
import functools

import jax
import jax.numpy as jnp
from jax.experimental import pallas as pl
from jax.experimental.pallas import tpu as pltpu


def _saliency_kernel(x_ref, out_ref,
                     acc_rg, acc_yb, acc_rg2, acc_yb2, shift_ref,
                     *, n_pix, pad_count, ddof_denom, inv_numel):
    pid = pl.program_id(0)

    # Load channels individually in their native dtype; cast on the VPU.
    r = x_ref[0].astype(jnp.float32)       # (TILE_ROWS, 128)
    g = x_ref[1].astype(jnp.float32)
    b = x_ref[2].astype(jnp.float32)
    rg = r - g
    yb = 0.5 * (r + g) - b

    @pl.when(pid == 0)
    def _init():
        # Shift estimate from the first tile.  Any value is algebraically
        # valid for the shifted-moment formulas; a near-mean value avoids
        # cancellation in sumsq - n*mean^2 for near-constant patches.
        inv_tile = 1.0 / float(rg.size)
        shift_ref[0] = jnp.sum(rg) * inv_tile
        shift_ref[1] = jnp.sum(yb) * inv_tile
        acc_rg[...] = jnp.zeros_like(acc_rg)
        acc_yb[...] = jnp.zeros_like(acc_yb)
        acc_rg2[...] = jnp.zeros_like(acc_rg2)
        acc_yb2[...] = jnp.zeros_like(acc_yb2)

    k_rg = shift_ref[0]
    k_yb = shift_ref[1]
    d_rg = rg - k_rg
    d_yb = yb - k_yb

    # Pure VPU accumulation into tile-shaped f32 accumulators; no per-tile
    # XLU reduction on the hot path.
    acc_rg[...] += d_rg
    acc_yb[...] += d_yb
    acc_rg2[...] += d_rg * d_rg
    acc_yb2[...] += d_yb * d_yb

    @pl.when(pid == pl.num_programs(0) - 1)
    def _finalize():
        # Single XLU reduce per accumulator, once for the whole patch.
        # Padded pixels were r=g=b=0, so each contributed (-k) to the shifted
        # sum and k^2 to the shifted sum of squares; remove them exactly
        # (pad_count is a compile-time constant).
        s_rg = jnp.sum(acc_rg[...]) + pad_count * k_rg
        s_yb = jnp.sum(acc_yb[...]) + pad_count * k_yb
        ss_rg = jnp.sum(acc_rg2[...]) - pad_count * (k_rg * k_rg)
        ss_yb = jnp.sum(acc_yb2[...]) - pad_count * (k_yb * k_yb)

        inv_n = 1.0 / n_pix
        mean_rg = s_rg * inv_n + k_rg
        mean_yb = s_yb * inv_n + k_yb
        # torch.std default: unbiased (divide by N-1); guarded for N == 1.
        var_rg = (ss_rg - s_rg * s_rg * inv_n) / ddof_denom
        var_yb = (ss_yb - s_yb * s_yb * inv_n) / ddof_denom

        sigma_rg = jnp.sqrt(jnp.maximum(var_rg, 0.0)) + 1e-8
        sigma_yb = jnp.sqrt(jnp.maximum(var_yb, 0.0)) + 1e-8
        mu_rg = mean_rg + 1e-8
        mu_yb = mean_yb + 1e-8

        sl = jnp.sqrt(sigma_rg * sigma_rg + sigma_yb * sigma_yb) \
            + 0.3 * jnp.sqrt(mu_rg * mu_rg + mu_yb * mu_yb)
        out_ref[0, 0] = sl * inv_numel


def saliency_loss(adv_patch: jax.Array, *, max_tile_rows: int = 1024) -> jax.Array:
    """adv_patch: float array [3, H, W].  Returns the scalar colorfulness loss.

    Each grid step processes (3, max_tile_rows, 128) pixels; at the default
    1024 rows that is ~1.5 MiB per double-buffered f32 input tile, which fits
    the default scoped VMEM on v5e / v6e / v7x.  Raise on v5e/v6e for very
    large patches to amortize the ~0.35 us per-step overhead.
    """
    assert adv_patch.ndim == 3 and adv_patch.shape[0] == 3
    _, h, w = adv_patch.shape
    hw = h * w

    # Lane-dense layout: flatten pixels, pad to (rows, 128) with rows a
    # multiple of both 8 (sublanes) and the tile height.
    rows = pl.cdiv(hw, 128)
    rows = ((rows + 7) // 8) * 8
    tile_rows = min(rows, max_tile_rows)
    n_tiles = pl.cdiv(rows, tile_rows)
    total_rows = n_tiles * tile_rows
    pad = total_rows * 128 - hw

    x = adv_patch.reshape(3, hw)              # keep native dtype for the DMA
    if pad:
        x = jnp.pad(x, ((0, 0), (0, pad)))    # zeros => rg = yb = 0 (corrected)
    x = x.reshape(3, total_rows, 128)

    kernel = functools.partial(
        _saliency_kernel,
        n_pix=float(hw),
        pad_count=float(pad),
        ddof_denom=float(max(hw - 1, 1)),
        inv_numel=1.0 / float(3 * hw),
    )

    out = pl.pallas_call(
        kernel,
        out_shape=jax.ShapeDtypeStruct((1, 1), jnp.float32),
        grid_spec=pltpu.PrefetchScalarGridSpec(
            num_scalar_prefetch=0,
            grid=(n_tiles,),
            in_specs=[pl.BlockSpec((3, tile_rows, 128), lambda i: (0, i, 0))],
            out_specs=pl.BlockSpec(memory_space=pltpu.MemorySpace.SMEM),
            scratch_shapes=[
                pltpu.VMEM((tile_rows, 128), jnp.float32),   # acc_rg
                pltpu.VMEM((tile_rows, 128), jnp.float32),   # acc_yb
                pltpu.VMEM((tile_rows, 128), jnp.float32),   # acc_rg^2
                pltpu.VMEM((tile_rows, 128), jnp.float32),   # acc_yb^2
                pltpu.SMEM((2,), jnp.float32),               # shift (k_rg, k_yb)
            ],
        ),
        compiler_params=pltpu.CompilerParams(
            dimension_semantics=("arbitrary",),
        ),
    )(x)
    return out[0, 0]


def _saliency_loss_ref(adv_patch: jax.Array) -> jax.Array:
    """Plain-JAX reference matching the PyTorch forward."""
    x = adv_patch.astype(jnp.float32)
    r, g, b = x[0], x[1], x[2]
    rg = r - g
    yb = 0.5 * (r + g) - b
    mu_rg = jnp.mean(rg) + 1e-8
    mu_yb = jnp.mean(yb) + 1e-8
    sigma_rg = jnp.std(rg, ddof=1) + 1e-8
    sigma_yb = jnp.std(yb, ddof=1) + 1e-8
    sl = jnp.sqrt(sigma_rg ** 2 + sigma_yb ** 2) \
        + 0.3 * jnp.sqrt(mu_rg ** 2 + mu_yb ** 2)
    return sl / x.size


if __name__ == "__main__":
    key = jax.random.PRNGKey(0)
    k1, k2 = jax.random.split(key)

    # Canonical small patch (single grid step, exercises padding correction).
    patch_small = jax.random.uniform(k1, (3, 16, 16), dtype=jnp.float32)
    out_small = jax.block_until_ready(saliency_loss(patch_small))
    ref_small = _saliency_loss_ref(patch_small)
    assert jnp.allclose(out_small, ref_small, rtol=1e-5, atol=1e-6), (out_small, ref_small)

    # Larger patch with a tiny tile to exercise the multi-step accumulation
    # path (4 grid steps, shift carried across steps in SMEM scratch).
    patch_big = jax.random.uniform(k2, (3, 64, 64), dtype=jnp.float32)
    out_big = jax.block_until_ready(saliency_loss(patch_big, max_tile_rows=8))
    ref_big = _saliency_loss_ref(patch_big)
    assert jnp.allclose(out_big, ref_big, rtol=1e-5, atol=1e-6), (out_big, ref_big)

    print("KERNEL_OK")
</pallas_src>

<mosaic_0001>
module attributes {stable_mosaic.version = 11 : i64} {
  func.func @_saliency_kernel(%arg0: i32, %arg1: memref<3x8x128xf32, #tpu.memory_space<vmem>>, %arg2: memref<1x1xf32, #tpu.memory_space<smem>>, %arg3: memref<8x128xf32, #tpu.memory_space<vmem>>, %arg4: memref<8x128xf32, #tpu.memory_space<vmem>>, %arg5: memref<8x128xf32, #tpu.memory_space<vmem>>, %arg6: memref<8x128xf32, #tpu.memory_space<vmem>>, %arg7: memref<2xf32, #tpu.memory_space<smem>>) attributes {dimension_semantics = [#tpu.dimension_semantics<arbitrary>], iteration_bounds = array<i64: 1>, scalar_prefetch = 0 : i64, scratch_operands = 5 : i64, tpu.core_type = #tpu.core_type<tc>, window_params = [{transform_indices = @transform_0, window_bounds = array<i64: 3, 8, 128>}, {transform_indices = @transform_1, window_bounds = array<i64: 1, 1>}]} {
    %c0 = arith.constant 0 : index
    %c0_0 = arith.constant 0 : index
    %c0_1 = arith.constant 0 : index
    %0 = vector.load %arg1[%c0, %c0_0, %c0_1] : memref<3x8x128xf32, #tpu.memory_space<vmem>>, vector<1x8x128xf32>
    %1 = vector.shape_cast %0 : vector<1x8x128xf32> to vector<8x128xf32>
    %c1 = arith.constant 1 : index
    %c0_2 = arith.constant 0 : index
    %c0_3 = arith.constant 0 : index
    %2 = vector.load %arg1[%c1, %c0_2, %c0_3] : memref<3x8x128xf32, #tpu.memory_space<vmem>>, vector<1x8x128xf32>
    %3 = vector.shape_cast %2 : vector<1x8x128xf32> to vector<8x128xf32>
    %c2 = arith.constant 2 : index
    %c0_4 = arith.constant 0 : index
    %c0_5 = arith.constant 0 : index
    %4 = vector.load %arg1[%c2, %c0_4, %c0_5] : memref<3x8x128xf32, #tpu.memory_space<vmem>>, vector<1x8x128xf32>
    %5 = vector.shape_cast %4 : vector<1x8x128xf32> to vector<8x128xf32>
    %6 = arith.subf %1, %3 : vector<8x128xf32>
    %7 = arith.addf %1, %3 : vector<8x128xf32>
    %cst = arith.constant 5.000000e-01 : f32
    %8 = vector.broadcast %cst : f32 to vector<8x128xf32>
    %9 = arith.mulf %8, %7 : vector<8x128xf32>
    %10 = arith.subf %9, %5 : vector<8x128xf32>
    %c0_i32 = arith.constant 0 : i32
    %11 = arith.cmpi eq, %arg0, %c0_i32 : i32
    %12 = arith.extui %11 : i1 to i32
    %c0_i32_6 = arith.constant 0 : i32
    %13 = arith.cmpi ne, %12, %c0_i32_6 : i32
    scf.if %13 {
      %37 = vector.shape_cast %6 : vector<8x128xf32> to vector<1x8x128xf32>
      %cst_27 = arith.constant dense<0.000000e+00> : vector<1xf32>
      %38 = vector.multi_reduction <add>, %37, %cst_27 [1, 2] : vector<1x8x128xf32> to vector<1xf32>
      %39 = vector.shape_cast %38 : vector<1xf32> to vector<1x1x1xf32>
      %40 = vector.extract %39[0, 0, 0] : f32 from vector<1x1x1xf32>
      %cst_28 = arith.constant 9.765625E-4 : f32
      %41 = arith.mulf %40, %cst_28 : f32
      %c0_29 = arith.constant 0 : index
      %42 = memref.load %arg7[%c0_29] : memref<2xf32, #tpu.memory_space<smem>>
      memref.store %41, %arg7[%c0_29] : memref<2xf32, #tpu.memory_space<smem>>
      %43 = vector.shape_cast %10 : vector<8x128xf32> to vector<1x8x128xf32>
      %cst_30 = arith.constant dense<0.000000e+00> : vector<1xf32>
      %44 = vector.multi_reduction <add>, %43, %cst_30 [1, 2] : vector<1x8x128xf32> to vector<1xf32>
      %45 = vector.shape_cast %44 : vector<1xf32> to vector<1x1x1xf32>
      %46 = vector.extract %45[0, 0, 0] : f32 from vector<1x1x1xf32>
      %cst_31 = arith.constant 9.765625E-4 : f32
      %47 = arith.mulf %46, %cst_31 : f32
      %c1_32 = arith.constant 1 : index
      %48 = memref.load %arg7[%c1_32] : memref<2xf32, #tpu.memory_space<smem>>
      memref.store %47, %arg7[%c1_32] : memref<2xf32, #tpu.memory_space<smem>>
      %cst_33 = arith.constant 0.000000e+00 : f32
      %49 = vector.broadcast %cst_33 : f32 to vector<8x128xf32>
      %c0_34 = arith.constant 0 : index
      %c0_35 = arith.constant 0 : index
      %50 = vector.load %arg3[%c0_34, %c0_35] : memref<8x128xf32, #tpu.memory_space<vmem>>, vector<8x128xf32>
      tpu.vector_store %arg3[%c0_34, %c0_35], %49 {strides = array<i32>} : memref<8x128xf32, #tpu.memory_space<vmem>>, vector<8x128xf32>,
      %cst_36 = arith.constant 0.000000e+00 : f32
      %51 = vector.broadcast %cst_36 : f32 to vector<8x128xf32>
      %c0_37 = arith.constant 0 : index
      %c0_38 = arith.constant 0 : index
      %52 = vector.load %arg4[%c0_37, %c0_38] : memref<8x128xf32, #tpu.memory_space<vmem>>, vector<8x128xf32>
      tpu.vector_store %arg4[%c0_37, %c0_38], %51 {strides = array<i32>} : memref<8x128xf32, #tpu.memory_space<vmem>>, vector<8x128xf32>,
      %cst_39 = arith.constant 0.000000e+00 : f32
      %53 = vector.broadcast %cst_39 : f32 to vector<8x128xf32>
      %c0_40 = arith.constant 0 : index
      %c0_41 = arith.constant 0 : index
      %54 = vector.load %arg5[%c0_40, %c0_41] : memref<8x128xf32, #tpu.memory_space<vmem>>, vector<8x128xf32>
      tpu.vector_store %arg5[%c0_40, %c0_41], %53 {strides = array<i32>} : memref<8x128xf32, #tpu.memory_space<vmem>>, vector<8x128xf32>,
      %cst_42 = arith.constant 0.000000e+00 : f32
      %55 = vector.broadcast %cst_42 : f32 to vector<8x128xf32>
      %c0_43 = arith.constant 0 : index
      %c0_44 = arith.constant 0 : index
      %56 = vector.load %arg6[%c0_43, %c0_44] : memref<8x128xf32, #tpu.memory_space<vmem>>, vector<8x128xf32>
      tpu.vector_store %arg6[%c0_43, %c0_44], %55 {strides = array<i32>} : memref<8x128xf32, #tpu.memory_space<vmem>>, vector<8x128xf32>,
    } else {
    }
    %c0_7 = arith.constant 0 : index
    %14 = memref.load %arg7[%c0_7] : memref<2xf32, #tpu.memory_space<smem>>
    %c1_8 = arith.constant 1 : index
    %15 = memref.load %arg7[%c1_8] : memref<2xf32, #tpu.memory_space<smem>>
    %16 = vector.broadcast %14 : f32 to vector<8x128xf32>
    %17 = arith.subf %6, %16 : vector<8x128xf32>
    %18 = vector.broadcast %15 : f32 to vector<8x128xf32>
    %19 = arith.subf %10, %18 : vector<8x128xf32>
    %c0_9 = arith.constant 0 : index
    %c0_10 = arith.constant 0 : index
    %20 = vector.load %arg3[%c0_9, %c0_10] : memref<8x128xf32, #tpu.memory_space<vmem>>, vector<8x128xf32>
    %21 = arith.addf %20, %17 : vector<8x128xf32>
    %c0_11 = arith.constant 0 : index
    %c0_12 = arith.constant 0 : index
    %22 = vector.load %arg3[%c0_11, %c0_12] : memref<8x128xf32, #tpu.memory_space<vmem>>, vector<8x128xf32>
    tpu.vector_store %arg3[%c0_11, %c0_12], %21 {strides = array<i32>} : memref<8x128xf32, #tpu.memory_space<vmem>>, vector<8x128xf32>,
    %c0_13 = arith.constant 0 : index
    %c0_14 = arith.constant 0 : index
    %23 = vector.load %arg4[%c0_13, %c0_14] : memref<8x128xf32, #tpu.memory_space<vmem>>, vector<8x128xf32>
    %24 = arith.addf %23, %19 : vector<8x128xf32>
    %c0_15 = arith.constant 0 : index
    %c0_16 = arith.constant 0 : index
    %25 = vector.load %arg4[%c0_15, %c0_16] : memref<8x128xf32, #tpu.memory_space<vmem>>, vector<8x128xf32>
    tpu.vector_store %arg4[%c0_15, %c0_16], %24 {strides = array<i32>} : memref<8x128xf32, #tpu.memory_space<vmem>>, vector<8x128xf32>,
    %c0_17 = arith.constant 0 : index
    %c0_18 = arith.constant 0 : index
    %26 = vector.load %arg5[%c0_17, %c0_18] : memref<8x128xf32, #tpu.memory_space<vmem>>, vector<8x128xf32>
    %27 = arith.mulf %17, %17 : vector<8x128xf32>
    %28 = arith.addf %26, %27 : vector<8x128xf32>
    %c0_19 = arith.constant 0 : index
    %c0_20 = arith.constant 0 : index
    %29 = vector.load %arg5[%c0_19, %c0_20] : memref<8x128xf32, #tpu.memory_space<vmem>>, vector<8x128xf32>
    tpu.vector_store %arg5[%c0_19, %c0_20], %28 {strides = array<i32>} : memref<8x128xf32, #tpu.memory_space<vmem>>, vector<8x128xf32>,
    %c0_21 = arith.constant 0 : index
    %c0_22 = arith.constant 0 : index
    %30 = vector.load %arg6[%c0_21, %c0_22] : memref<8x128xf32, #tpu.memory_space<vmem>>, vector<8x128xf32>
    %31 = arith.mulf %19, %19 : vector<8x128xf32>
    %32 = arith.addf %30, %31 : vector<8x128xf32>
    %c0_23 = arith.constant 0 : index
    %c0_24 = arith.constant 0 : index
    %33 = vector.load %arg6[%c0_23, %c0_24] : memref<8x128xf32, #tpu.memory_space<vmem>>, vector<8x128xf32>
    tpu.vector_store %arg6[%c0_23, %c0_24], %32 {strides = array<i32>} : memref<8x128xf32, #tpu.memory_space<vmem>>, vector<8x128xf32>,
    %c0_i32_25 = arith.constant 0 : i32
    %34 = arith.cmpi eq, %arg0, %c0_i32_25 : i32
    %35 = arith.extui %34 : i1 to i32
    %c0_i32_26 = arith.constant 0 : i32
    %36 = arith.cmpi ne, %35, %c0_i32_26 : i32
    scf.if %36 {
      %c0_27 = arith.constant 0 : index
      %c0_28 = arith.constant 0 : index
      %37 = vector.load %arg3[%c0_27, %c0_28] : memref<8x128xf32, #tpu.memory_space<vmem>>, vector<8x128xf32>
      %38 = vector.shape_cast %37 : vector<8x128xf32> to vector<1x8x128xf32>
      %cst_29 = arith.constant dense<0.000000e+00> : vector<1xf32>
      %39 = vector.multi_reduction <add>, %38, %cst_29 [1, 2] : vector<1x8x128xf32> to vector<1xf32>
      %40 = vector.shape_cast %39 : vector<1xf32> to vector<1x1x1xf32>
      %41 = vector.extract %40[0, 0, 0] : f32 from vector<1x1x1xf32>
      %cst_30 = arith.constant 7.680000e+02 : f32
      %42 = arith.mulf %cst_30, %14 : f32
      %43 = arith.addf %41, %42 : f32
      %c0_31 = arith.constant 0 : index
      %c0_32 = arith.constant 0 : index
      %44 = vector.load %arg4[%c0_31, %c0_32] : memref<8x128xf32, #tpu.memory_space<vmem>>, vector<8x128xf32>
      %45 = vector.shape_cast %44 : vector<8x128xf32> to vector<1x8x128xf32>
      %cst_33 = arith.constant dense<0.000000e+00> : vector<1xf32>
      %46 = vector.multi_reduction <add>, %45, %cst_33 [1, 2] : vector<1x8x128xf32> to vector<1xf32>
      %47 = vector.shape_cast %46 : vector<1xf32> to vector<1x1x1xf32>
      %48 = vector.extract %47[0, 0, 0] : f32 from vector<1x1x1xf32>
      %cst_34 = arith.constant 7.680000e+02 : f32
      %49 = arith.mulf %cst_34, %15 : f32
      %50 = arith.addf %48, %49 : f32
      %c0_35 = arith.constant 0 : index
      %c0_36 = arith.constant 0 : index
      %51 = vector.load %arg5[%c0_35, %c0_36] : memref<8x128xf32, #tpu.memory_space<vmem>>, vector<8x128xf32>
      %52 = vector.shape_cast %51 : vector<8x128xf32> to vector<1x8x128xf32>
      %cst_37 = arith.constant dense<0.000000e+00> : vector<1xf32>
      %53 = vector.multi_reduction <add>, %52, %cst_37 [1, 2] : vector<1x8x128xf32> to vector<1xf32>
      %54 = vector.shape_cast %53 : vector<1xf32> to vector<1x1x1xf32>
      %55 = vector.extract %54[0, 0, 0] : f32 from vector<1x1x1xf32>
      %56 = arith.mulf %14, %14 : f32
      %cst_38 = arith.constant 7.680000e+02 : f32
      %57 = arith.mulf %cst_38, %56 : f32
      %58 = arith.subf %55, %57 : f32
      %c0_39 = arith.constant 0 : index
      %c0_40 = arith.constant 0 : index
      %59 = vector.load %arg6[%c0_39, %c0_40] : memref<8x128xf32, #tpu.memory_space<vmem>>, vector<8x128xf32>
      %60 = vector.shape_cast %59 : vector<8x128xf32> to vector<1x8x128xf32>
      %cst_41 = arith.constant dense<0.000000e+00> : vector<1xf32>
      %61 = vector.multi_reduction <add>, %60, %cst_41 [1, 2] : vector<1x8x128xf32> to vector<1xf32>
      %62 = vector.shape_cast %61 : vector<1xf32> to vector<1x1x1xf32>
      %63 = vector.extract %62[0, 0, 0] : f32 from vector<1x1x1xf32>
      %64 = arith.mulf %15, %15 : f32
      %cst_42 = arith.constant 7.680000e+02 : f32
      %65 = arith.mulf %cst_42, %64 : f32
      %66 = arith.subf %63, %65 : f32
      %cst_43 = arith.constant 3.906250e-03 : f32
      %67 = arith.mulf %43, %cst_43 : f32
      %68 = arith.addf %67, %14 : f32
      %cst_44 = arith.constant 3.906250e-03 : f32
      %69 = arith.mulf %50, %cst_44 : f32
      %70 = arith.addf %69, %15 : f32
      %71 = arith.mulf %43, %43 : f32
      %cst_45 = arith.constant 3.906250e-03 : f32
      %72 = arith.mulf %71, %cst_45 : f32
      %73 = arith.subf %58, %72 : f32
      %cst_46 = arith.constant 2.550000e+02 : f32
      %74 = arith.divf %73, %cst_46 : f32
      %75 = arith.mulf %50, %50 : f32
      %cst_47 = arith.constant 3.906250e-03 : f32
      %76 = arith.mulf %75, %cst_47 : f32
      %77 = arith.subf %66, %76 : f32
      %cst_48 = arith.constant 2.550000e+02 : f32
      %78 = arith.divf %77, %cst_48 : f32
      %cst_49 = arith.constant 0.000000e+00 : f32
      %79 = arith.maximumf %74, %cst_49 : f32
      %80 = math.sqrt %79 : f32
      %cst_50 = arith.constant 9.99999993E-9 : f32
      %81 = arith.addf %80, %cst_50 : f32
      %cst_51 = arith.constant 0.000000e+00 : f32
      %82 = arith.maximumf %78, %cst_51 : f32
      %83 = math.sqrt %82 : f32
      %cst_52 = arith.constant 9.99999993E-9 : f32
      %84 = arith.addf %83, %cst_52 : f32
      %cst_53 = arith.constant 9.99999993E-9 : f32
      %85 = arith.addf %68, %cst_53 : f32
      %cst_54 = arith.constant 9.99999993E-9 : f32
      %86 = arith.addf %70, %cst_54 : f32
      %87 = arith.mulf %81, %81 : f32
      %88 = arith.mulf %84, %84 : f32
      %89 = arith.addf %87, %88 : f32
      %90 = math.sqrt %89 : f32
      %91 = arith.mulf %85, %85 : f32
      %92 = arith.mulf %86, %86 : f32
      %93 = arith.addf %91, %92 : f32
      %94 = math.sqrt %93 : f32
      %cst_55 = arith.constant 3.000000e-01 : f32
      %95 = arith.mulf %cst_55, %94 : f32
      %96 = arith.addf %90, %95 : f32
      %cst_56 = arith.constant 0.00130208337 : f32
      %97 = arith.mulf %96, %cst_56 : f32
      %c0_57 = arith.constant 0 : index
      %c0_58 = arith.constant 0 : index
      %98 = memref.load %arg2[%c0_57, %c0_58] : memref<1x1xf32, #tpu.memory_space<smem>>
      memref.store %97, %arg2[%c0_57, %c0_58] : memref<1x1xf32, #tpu.memory_space<smem>>
    } else {
    }
    return
  }
  func.func @transform_0(%arg0: i32) -> (i32, i32, i32) {
    %c0_i32 = arith.constant 0 : i32
    %c0_i32_0 = arith.constant 0 : i32
    %c0_i32_1 = arith.constant 0 : i32
    return %c0_i32, %arg0, %c0_i32_0 : i32, i32, i32
  }
  func.func @transform_1(%arg0: i32) -> (i32, i32) {
    %c0_i32 = arith.constant 0 : i32
    %c0_i32_0 = arith.constant 0 : i32
    %c0_i32_1 = arith.constant 0 : i32
    return %c0_i32, %c0_i32_0 : i32, i32
  }
}

</mosaic_0001>

<llo_original>
// kernel: tpu_custom_call.1
$region0: #{tpu_custom_call.1}
  #allocation0 [shape = 'u32[]', space=smem, size = 0x4, offset = 0x4, fixed_abs, tag = 'smem constant byte address 0x4 - core index']
  #allocation1 [shape = 'u32[144,128]{1,0:T(1,128)}', space=vmem, size = 0x12000, scoped, tag = 'internal scratch']
  #allocation2 [shape = 'f32[8,128]{1,0:T(8,128)}', space=vmem, size = 0x1000, scoped, tag = 'scratch operand']
  #allocation3 [shape = 'f32[8,128]{1,0:T(8,128)}', space=vmem, size = 0x1000, scoped, tag = 'scratch operand']
  #allocation4 [shape = 'f32[8,128]{1,0:T(8,128)}', space=vmem, size = 0x1000, scoped, tag = 'scratch operand']
  #allocation5 [shape = 'f32[8,128]{1,0:T(8,128)}', space=vmem, size = 0x1000, scoped, tag = 'scratch operand']
  #allocation6 [shape = 'f32[2]{0:T(128)}', space=smem, size = 0x200, scoped, tag = 'scratch operand']
  %s0 = inlined_call_operand.hbm [shape: f32[3,8,128], index: 0, kind: input, shape index: {}]
  %s1 = inlined_call_operand.hbm [shape: f32[1,1], index: 1, kind: output, shape index: {}]
  %s2 = sld [smem:[#allocation0]]
  $region26: #{tpu_custom_call.1} parent=0
    _
  %s4 = ssub.s32 1, %s2
  %s5 = scalar_select 0, %s4, %s2
  $region1: #{tpu_custom_call.1} parent=0
    #allocation7 [shape = 'u8[12288]{0}', space=vmem, size = 0x3000, scoped, tag = 'input window, operand 0, single buffered']
    #allocation8 [shape = 's32[1]{0}', space=sflag, size = 0x4, scoped, tag = 'scoped memory for tpu_custom_call.1']
    #allocation9 [shape = 's32[1]{0}', space=sflag, size = 0x4, scoped, tag = 'scoped memory for tpu_custom_call.1']
    #allocation10 [shape = 'u8[512]{0}', space=smem, size = 0x200, scoped, tag = 'output window, operand 0, single buffered']
    %6 = vsyncpa [#allocation8], 0
    %7 = vsyncpa [#allocation9], 0
    // Predicated region
    $region2: #{tpu_custom_call.1} parent=1 // pred_check
      _
    $region3: #{tpu_custom_call.1} parent=1 // pred_check_branch
      %9 = sbr.rel (0) target = $region5
    $region4: #{tpu_custom_call.1} parent=1 // pred_region
      %s11 = ssub.s32 384, 384
      %12 = vsyncadd [#allocation8], %s11
      %s13 = sshll.u32 [#allocation7], 4
      %s14 = int_to_ptr.vmem [resolvable:$true] %s13
      %19 = dma.hbm_to_vmem [thread:$0]  %s0, 384, %s14, [#allocation8], 128, 128, 8
    $region5: #{tpu_custom_call.1} parent=1 // pred_fallthru
      _
    // Predicated region
    $region6: #{tpu_custom_call.1} parent=1 // pred_check
      _
    $region7: #{tpu_custom_call.1} parent=1 // pred_check_branch
      %21 = sbr.rel (0) target = $region9
    $region8: #{tpu_custom_call.1} parent=1 // pred_region
      %22 = dma.done [#allocation8], 384
    $region9: #{tpu_custom_call.1} parent=1 // pred_fallthru
      _
    %v23 = vld [vmem:[#allocation7] sm:$0xff]
    %s24 = scalar_lea.vmem [#allocation7], 8
    %v25 = vld [vmem:[%s24] sm:$0xff]
    %s26 = scalar_lea.vmem [#allocation7], 16
    %v27 = vld [vmem:[%s26] sm:$0xff]
    %v28 = vsub.f32 %v23, %v25
    %v29 = vadd.f32 %v23, %v25
    %v30 = vmul.f32 %v29, 0.5
    %v31 = vsub.f32 %v30, %v27
    %p32 = scmp.eq.s32.totalorder 0, 0
    // Predicated region
    $region10: #{tpu_custom_call.1} parent=1 // pred_check
      %p33 = pneg %p32
    $region11: #{tpu_custom_call.1} parent=1 // pred_check_branch
      %35 = sbr.rel (%p33) target = $region13
    $region12: #{tpu_custom_call.1} parent=1 // pred_region
      %36 = vadd.xlane.f32.xlu0 %v28
      %v37 = vpop.xlane.xlu0 %36
      %v38 = vrot.slane %v37, 4
      %v39 = vadd.f32 %v37, %v38
      %v40 = vrot.slane %v39, 2
      %v41 = vadd.f32 %v39, %v40
      %v42 = vrot.slane %v41, 1
      %v43 = vadd.f32 %v41, %v42
      %s44 = vtos %v43
      %s45 = smul.f32 %s44, 0.0009765625
      %s46 = scalar_lea.smem [#allocation6], 0
      %47 = sst [smem:[%s46]] %s45
      %48 = vadd.xlane.f32.xlu0 %v31
      %v49 = vpop.xlane.xlu0 %48
      %v50 = vrot.slane %v49, 4
      %v51 = vadd.f32 %v49, %v50
      %v52 = vrot.slane %v51, 2
      %v53 = vadd.f32 %v51, %v52
      %v54 = vrot.slane %v53, 1
      %v55 = vadd.f32 %v53, %v54
      %s56 = vtos %v55
      %s57 = smul.f32 %s56, 0.0009765625
      %s58 = scalar_lea.smem [#allocation6], 1
      %59 = sst [smem:[%s58]] %s57
      %60 = vst [vmem:[#allocation2] sm:$0xff] 0.0
      %61 = vst [vmem:[#allocation3] sm:$0xff] 0.0
      %62 = vst [vmem:[#allocation4] sm:$0xff] 0.0
      %63 = vst [vmem:[#allocation5] sm:$0xff] 0.0
    $region13: #{tpu_custom_call.1} parent=1 // pred_fallthru
      _
    %s64 = sld [smem:[#allocation6]]
    %s65 = sld [smem:[#allocation6 + $0x1]]
    %v66 = vstv %s64
    %v67 = vsub.f32 %v28, %v66
    %v68 = vstv %s65
    %v69 = vsub.f32 %v31, %v68
    %v70 = vld [vmem:[#allocation2] sm:$0xff]
    %v71 = vadd.f32 %v70, %v67
    %72 = vst [vmem:[#allocation2] sm:$0xff] %v71
    %v73 = vld [vmem:[#allocation3] sm:$0xff]
    %v74 = vadd.f32 %v73, %v69
    %75 = vst [vmem:[#allocation3] sm:$0xff] %v74
    %v76 = vld [vmem:[#allocation4] sm:$0xff]
    %v77 = vmul.f32 %v67, %v67
    %v78 = vadd.f32 %v76, %v77
    %79 = vst [vmem:[#allocation4] sm:$0xff] %v78
    %v80 = vld [vmem:[#allocation5] sm:$0xff]
    %v81 = vmul.f32 %v69, %v69
    %v82 = vadd.f32 %v80, %v81
    %83 = vst [vmem:[#allocation5] sm:$0xff] %v82
    // Predicated region
    $region14: #{tpu_custom_call.1} parent=1 // pred_check
      %p84 = pneg %p32
    $region15: #{tpu_custom_call.1} parent=1 // pred_check_branch
      %86 = sbr.rel (%p84) target = $region17
    $region16: #{tpu_custom_call.1} parent=1 // pred_region
      %v87 = vld [vmem:[#allocation2] sm:$0xff]
      %88 = vadd.xlane.f32.xlu0 %v87
      %v89 = vpop.xlane.xlu0 %88
      %v90 = vrot.slane %v89, 4
      %v91 = vadd.f32 %v89, %v90
      %v92 = vrot.slane %v91, 2
      %v93 = vadd.f32 %v91, %v92
      %v94 = vrot.slane %v93, 1
      %v95 = vadd.f32 %v93, %v94
      %s96 = vtos %v95
      %s97 = smul.f32 %s64, 768.0
      %s98 = sadd.f32 %s96, %s97
      %v99 = vld [vmem:[#allocation3] sm:$0xff]
      %100 = vadd.xlane.f32.xlu0 %v99
      %v101 = vpop.xlane.xlu0 %100
      %v102 = vrot.slane %v101, 4
      %v103 = vadd.f32 %v101, %v102
      %v104 = vrot.slane %v103, 2
      %v105 = vadd.f32 %v103, %v104
      %v106 = vrot.slane %v105, 1
      %v107 = vadd.f32 %v105, %v106
      %s108 = vtos %v107
      %s109 = smul.f32 %s65, 768.0
      %s110 = sadd.f32 %s108, %s109
      %v111 = vld [vmem:[#allocation4] sm:$0xff]
      %112 = vadd.xlane.f32.xlu0 %v111
      %v113 = vpop.xlane.xlu0 %112
      %v114 = vrot.slane %v113, 4
      %v115 = vadd.f32 %v113, %v114
      %v116 = vrot.slane %v115, 2
      %v117 = vadd.f32 %v115, %v116
      %v118 = vrot.slane %v117, 1
      %v119 = vadd.f32 %v117, %v118
      %s120 = vtos %v119
      %s121 = smul.f32 %s64, %s64
      %s122 = smul.f32 %s121, 768.0
      %s123 = ssub.f32 %s120, %s122
      %v124 = vld [vmem:[#allocation5] sm:$0xff]
      %125 = vadd.xlane.f32.xlu0 %v124
      %v126 = vpop.xlane.xlu0 %125
      %v127 = vrot.slane %v126, 4
      %v128 = vadd.f32 %v126, %v127
      %v129 = vrot.slane %v128, 2
      %v130 = vadd.f32 %v128, %v129
      %v131 = vrot.slane %v130, 1
      %v132 = vadd.f32 %v130, %v131
      %s133 = vtos %v132
      %s134 = smul.f32 %s65, %s65
      %s135 = smul.f32 %s134, 768.0
      %s136 = ssub.f32 %s133, %s135
      %s137 = smul.f32 %s98, 0.00390625
      %s138 = sadd.f32 %s137, %s64
      %s139 = smul.f32 %s110, 0.00390625
      %s140 = sadd.f32 %s139, %s65
      %s141 = smul.f32 %s98, %s98
      %s142 = smul.f32 %s141, 0.00390625
      %s143 = ssub.f32 %s123, %s142
      %v144 = vrcp.pop 255.0
      %s145 = vtos %v144
      %s146 = smul.f32 %s143, %s145
      %s147 = smul.f32 %s110, %s110
      %s148 = smul.f32 %s147, 0.00390625
      %s149 = ssub.f32 %s136, %s148
      %v150 = vrcp.pop 255.0
      %s151 = vtos %v150
      %s152 = smul.f32 %s149, %s151
      %s153 = smax.f32 %s146, 0.0
      %v154 = vstv %s153
      %v155 = vrsqrt.pop %v154
      %v156 = vmul.f32 %v154, %v155
      %vm157 = vcmp.eq.f32.partialorder %v154, inf
      %v158 = vsel %vm157, %v154, %v156
      %vm159 = vcmp.eq.f32.partialorder %v154, 0.0
      %v160 = vand.u32 %v154, 2147483648
      %v161 = vsel %vm159, %v160, %v158
      %s162 = vtos %v161
      %s163 = sadd.f32 %s162, 1e-08
      %s164 = smax.f32 %s152, 0.0
      %v165 = vstv %s164
      %v166 = vrsqrt.pop %v165
      %v167 = vmul.f32 %v165, %v166
      %vm168 = vcmp.eq.f32.partialorder %v165, inf
      %v169 = vsel %vm168, %v165, %v167
      %vm170 = vcmp.eq.f32.partialorder %v165, 0.0
      %v171 = vand.u32 %v165, 2147483648
      %v172 = vsel %vm170, %v171, %v169
      %s173 = vtos %v172
      %s174 = sadd.f32 %s173, 1e-08
      %s175 = sadd.f32 %s138, 1e-08
      %s176 = sadd.f32 %s140, 1e-08
      %s177 = smul.f32 %s163, %s163
      %s178 = smul.f32 %s174, %s174
      %s179 = sadd.f32 %s177, %s178
      %v180 = vstv %s179
      %v181 = vrsqrt.pop %v180
      %v182 = vmul.f32 %v180, %v181
      %vm183 = vcmp.eq.f32.partialorder %v180, inf
      %v184 = vsel %vm183, %v180, %v182
      %vm185 = vcmp.eq.f32.partialorder %v180, 0.0
      %v186 = vand.u32 %v180, 2147483648
      %v187 = vsel %vm185, %v186, %v184
      %s188 = vtos %v187
      %s189 = smul.f32 %s175, %s175
      %s190 = smul.f32 %s176, %s176
      %s191 = sadd.f32 %s189, %s190
      %v192 = vstv %s191
      %v193 = vrsqrt.pop %v192
      %v194 = vmul.f32 %v192, %v193
      %vm195 = vcmp.eq.f32.partialorder %v192, inf
      %v196 = vsel %vm195, %v192, %v194
      %vm197 = vcmp.eq.f32.partialorder %v192, 0.0
      %v198 = vand.u32 %v192, 2147483648
      %v199 = vsel %vm197, %v198, %v196
      %s200 = vtos %v199
      %s201 = smul.f32 %s200, 0.3
      %s202 = sadd.f32 %s188, %s201
      %s203 = smul.f32 %s202, 0.0013020834
      %s204 = scalar_lea.smem [#allocation10], 0
      %205 = sst [smem:[%s204]] %s203
    $region17: #{tpu_custom_call.1} parent=1 // pred_fallthru
      _
    // Predicated region
    $region18: #{tpu_custom_call.1} parent=1 // pred_check
      _
    $region19: #{tpu_custom_call.1} parent=1 // pred_check_branch
      %207 = sbr.rel (0) target = $region21
    $region20: #{tpu_custom_call.1} parent=1 // pred_region
      %s209 = ssub.s32 16, 16
      %210 = vsyncadd [#allocation9], %s209
      %213 = dma.smem_to_hbm [#allocation10], 16, %s1, [#allocation9]
    $region21: #{tpu_custom_call.1} parent=1 // pred_fallthru
      _
    // Predicated region
    $region22: #{tpu_custom_call.1} parent=1 // pred_check
      _
    $region23: #{tpu_custom_call.1} parent=1 // pred_check_branch
      %215 = sbr.rel (0) target = $region25
    $region24: #{tpu_custom_call.1} parent=1 // pred_region
      %216 = dma.done [#allocation9], 16
    $region25: #{tpu_custom_call.1} parent=1 // pred_fallthru
      _
    %217 = sfence
    %218 = vsyncpa [#allocation8], 1
    %219 = vsyncpa [#allocation9], 1

</llo_original>
